<compile_context>
chip_gen: v6e
topology: v6e:2x2x1
jax: 0.10.0
libtpu: 0.0.40
codegen_flags: <defaults>
</compile_context>

<pallas_src>
import functools

import jax
import jax.numpy as jnp
from jax.experimental import pallas as pl
from jax.experimental.pallas import tpu as pltpu


def _mlp_kernel(x_ref, w_ref, b_ref, out_ref, *, in_features):
    """Fused 4-layer MLP, batch-on-lanes.

    x_ref:   (F, tb)       input tile, batch on the lane axis
    w_ref:   (128, Kmax)   packed weights: rows 0:16 -> W0 (16,F),
                           32:64 -> W1 (32,16), 64:80 -> W2 (16,32),
                           96:112 col 0 -> W3^T (16,1)
    b_ref:   (32, 4)       packed biases, one column per layer
    out_ref: (1, tb)       lane-dense output tile
    """
    F = in_features
    x = x_ref[...].astype(jnp.float32)                         # (F, tb)
    b_all = b_ref[...]                                         # (32, 4)

    # layer 1: F -> 16, relu.   (16, F) @ (F, tb) -> (16, tb), N = tb lanes.
    w0 = w_ref[0:16, 0:F]
    b0 = b_all[0:16, 0:1]
    h = jnp.dot(w0, x, preferred_element_type=jnp.float32) + b0
    h = jnp.maximum(h, 0.0)

    # layer 2: 16 -> 32, relu.
    w1 = w_ref[32:64, 0:16]
    b1 = b_all[0:32, 1:2]
    h = jnp.dot(w1, h, preferred_element_type=jnp.float32) + b1
    h = jnp.maximum(h, 0.0)

    # layer 3: 32 -> 16, relu.
    w2 = w_ref[64:80, 0:32]
    b2 = b_all[0:16, 2:3]
    h = jnp.dot(w2, h, preferred_element_type=jnp.float32) + b2
    h = jnp.maximum(h, 0.0)

    # output layer: 16 -> 1.  An N=1 MXU matmul wastes the whole array, so do
    # it on the VPU (broadcast mul) + XLU (sublane reduce): still lane-dense.
    w3 = w_ref[96:112, 0:1]                                    # (16, 1)
    b3 = b_all[0:1, 3:4]                                       # (1, 1)
    y = jnp.sum(w3 * h, axis=0, keepdims=True) + b3            # (1, tb)

    out_ref[...] = y.astype(out_ref.dtype)


def _pack_params(params, in_features):
    """Pack 4 PyTorch-layout (out, in) weights / (out,) biases into 2 slabs."""
    kmax = max(in_features, 32)
    w_pack = jnp.zeros((128, kmax), jnp.float32)
    w_pack = w_pack.at[0:16, 0:in_features].set(params["w0"])   # (16, F)
    w_pack = w_pack.at[32:64, 0:16].set(params["w1"])           # (32, 16)
    w_pack = w_pack.at[64:80, 0:32].set(params["w2"])           # (16, 32)
    w_pack = w_pack.at[96:112, 0:1].set(params["w3"].T)         # (16, 1)
    b_pack = jnp.zeros((32, 4), jnp.float32)
    b_pack = b_pack.at[0:16, 0].set(params["b0"])
    b_pack = b_pack.at[0:32, 1].set(params["b1"])
    b_pack = b_pack.at[0:16, 2].set(params["b2"])
    b_pack = b_pack.at[0:1, 3].set(params["b3"])
    return w_pack, b_pack


def classifier_network_forward(x, params, *, tb=None):
    """x: (B, in_features) float32.  params: PyTorch-layout weights/biases."""
    B, F = x.shape

    # Lane-dense batch tiling: tiles are multiples of 128 lanes, big enough to
    # amortize the ~0.35us per-grid-step overhead, capped at 1024 so the
    # double-buffered x tile (2 * tb * F * 4B = 256 KiB at F=32) stays far
    # below every generation's scoped VMEM (16 MiB v5e, 32 MiB v6e/v7x).
    lane_b = 128 * pl.cdiv(B, 128)
    if tb is None:
        tb = min(1024, lane_b)
    tb = min(max(128, (tb // 128) * 128), lane_b)
    num_tiles = pl.cdiv(lane_b, tb)
    b_pad = num_tiles * tb

    # Batch-on-lanes layout: transpose in XLA, zero-pad batch to the tile grid.
    x_t = x.T                                                   # (F, B)
    if b_pad != B:
        x_t = jnp.pad(x_t, ((0, 0), (0, b_pad - B)))

    w_pack, b_pack = _pack_params(params, F)

    out = pl.pallas_call(
        functools.partial(_mlp_kernel, in_features=F),
        out_shape=jax.ShapeDtypeStruct((1, b_pad), x.dtype),
        grid_spec=pltpu.PrefetchScalarGridSpec(
            num_scalar_prefetch=0,
            grid=(num_tiles,),
            in_specs=[
                pl.BlockSpec((F, tb), lambda i: (0, i)),
                pl.BlockSpec((128, w_pack.shape[1]), lambda i: (0, 0)),
                pl.BlockSpec((32, 4), lambda i: (0, 0)),
            ],
            out_specs=pl.BlockSpec((1, tb), lambda i: (0, i)),
        ),
        compiler_params=pltpu.CompilerParams(
            dimension_semantics=("parallel",)),   # grid shards across v7x TCs
    )(x_t, w_pack, b_pack)

    # Back to the PyTorch (B, 1) convention, dropping any batch padding.
    return out[:, :B].T


def init_params(key, in_features):
    """PyTorch nn.Linear default init: U[-1/sqrt(fan_in), 1/sqrt(fan_in)].

    Weights in PyTorch (out, in) layout; biases (out,)."""
    layer_dims = [(in_features, 16), (16, 32), (32, 16), (16, 1)]
    params = {}
    keys = jax.random.split(key, 2 * len(layer_dims))
    for i, (fan_in, fan_out) in enumerate(layer_dims):
        bound = 1.0 / jnp.sqrt(jnp.float32(fan_in))
        params[f"w{i}"] = jax.random.uniform(
            keys[2 * i], (fan_out, fan_in), jnp.float32, -bound, bound)
        params[f"b{i}"] = jax.random.uniform(
            keys[2 * i + 1], (fan_out,), jnp.float32, -bound, bound)
    return params


def reference_forward(x, params):
    h = jnp.maximum(x @ params["w0"].T + params["b0"], 0.0)
    h = jnp.maximum(h @ params["w1"].T + params["b1"], 0.0)
    h = jnp.maximum(h @ params["w2"].T + params["b2"], 0.0)
    return h @ params["w3"].T + params["b3"]


if __name__ == "__main__":
    key = jax.random.PRNGKey(0)
    kx, kx2, kp = jax.random.split(key, 3)

    in_features = 32
    params = init_params(kp, in_features)

    # Small harness case (single grid step).
    batch = 16
    x = jax.random.normal(kx, (batch, in_features), jnp.float32)
    out = jax.block_until_ready(classifier_network_forward(x, params))
    ref = reference_forward(x, params)
    assert out.shape == (batch, 1), out.shape
    assert jnp.allclose(out, ref, atol=1e-5, rtol=1e-5), (
        f"max abs err {jnp.max(jnp.abs(out - ref))}")

    # Multi-tile path (grid=(3,), padded ragged tail), still small.
    batch2 = 300
    x2 = jax.random.normal(kx2, (batch2, in_features), jnp.float32)
    out2 = jax.block_until_ready(
        classifier_network_forward(x2, params, tb=128))
    ref2 = reference_forward(x2, params)
    assert out2.shape == (batch2, 1), out2.shape
    assert jnp.allclose(out2, ref2, atol=1e-5, rtol=1e-5), (
        f"max abs err {jnp.max(jnp.abs(out2 - ref2))}")

    print("KERNEL_OK")
</pallas_src>

<mosaic_0001>
module attributes {stable_mosaic.version = 11 : i64} {
  func.func @_mlp_kernel(%arg0: i32, %arg1: memref<32x128xf32, #tpu.memory_space<vmem>>, %arg2: memref<128x32xf32, #tpu.memory_space<vmem>>, %arg3: memref<32x4xf32, #tpu.memory_space<vmem>>, %arg4: memref<1x128xf32, #tpu.memory_space<vmem>>) attributes {dimension_semantics = [#tpu.dimension_semantics<parallel>], iteration_bounds = array<i64: 1>, scalar_prefetch = 0 : i64, scratch_operands = 0 : i64, tpu.core_type = #tpu.core_type<tc>, window_params = [{transform_indices = @transform_0, window_bounds = array<i64: 32, 128>}, {pipeline_mode = #tpu.pipeline_mode<synchronous>, transform_indices = @transform_1, window_bounds = array<i64: 128, 32>}, {pipeline_mode = #tpu.pipeline_mode<synchronous>, transform_indices = @transform_2, window_bounds = array<i64: 32, 4>}, {transform_indices = @transform_3, window_bounds = array<i64: 1, 128>}]} {
    %c0 = arith.constant 0 : index
    %c0_0 = arith.constant 0 : index
    %0 = vector.load %arg1[%c0, %c0_0] : memref<32x128xf32, #tpu.memory_space<vmem>>, vector<32x128xf32>
    %c0_1 = arith.constant 0 : index
    %c0_2 = arith.constant 0 : index
    %1 = vector.load %arg3[%c0_1, %c0_2] : memref<32x4xf32, #tpu.memory_space<vmem>>, vector<32x4xf32>
    %c0_3 = arith.constant 0 : index
    %c0_4 = arith.constant 0 : index
    %2 = vector.load %arg2[%c0_3, %c0_4] : memref<128x32xf32, #tpu.memory_space<vmem>>, vector<16x32xf32>
    %3 = vector.extract_strided_slice %1 {offsets = [0, 0], sizes = [16, 1], strides = [1, 1]} : vector<32x4xf32> to vector<16x1xf32>
    %cst = arith.constant dense<0.000000e+00> : vector<16x128xf32>
    %4 = tpu.matmul %2, %0, %cst {dimension_numbers = #tpu.dot_dimension_numbers<[1], [0], [0], [1], [0, 0, 1, 1], [], []>} : vector<16x32xf32>, vector<32x128xf32>, vector<16x128xf32> -> vector<16x128xf32>
    %5 = vector.broadcast %3 : vector<16x1xf32> to vector<16x128xf32>
    %6 = arith.addf %4, %5 : vector<16x128xf32>
    %cst_5 = arith.constant 0.000000e+00 : f32
    %7 = vector.broadcast %cst_5 : f32 to vector<16x128xf32>
    %8 = arith.maximumf %6, %7 : vector<16x128xf32>
    %c32 = arith.constant 32 : index
    %c0_6 = arith.constant 0 : index
    %9 = vector.load %arg2[%c32, %c0_6] : memref<128x32xf32, #tpu.memory_space<vmem>>, vector<32x16xf32>
    %10 = vector.extract_strided_slice %1 {offsets = [0, 1], sizes = [32, 1], strides = [1, 1]} : vector<32x4xf32> to vector<32x1xf32>
    %cst_7 = arith.constant dense<0.000000e+00> : vector<32x128xf32>
    %11 = tpu.matmul %9, %8, %cst_7 {dimension_numbers = #tpu.dot_dimension_numbers<[1], [0], [0], [1], [0, 0, 1, 1], [], []>} : vector<32x16xf32>, vector<16x128xf32>, vector<32x128xf32> -> vector<32x128xf32>
    %12 = vector.broadcast %10 : vector<32x1xf32> to vector<32x128xf32>
    %13 = arith.addf %11, %12 : vector<32x128xf32>
    %cst_8 = arith.constant 0.000000e+00 : f32
    %14 = vector.broadcast %cst_8 : f32 to vector<32x128xf32>
    %15 = arith.maximumf %13, %14 : vector<32x128xf32>
    %c64 = arith.constant 64 : index
    %c0_9 = arith.constant 0 : index
    %16 = vector.load %arg2[%c64, %c0_9] : memref<128x32xf32, #tpu.memory_space<vmem>>, vector<16x32xf32>
    %17 = vector.extract_strided_slice %1 {offsets = [0, 2], sizes = [16, 1], strides = [1, 1]} : vector<32x4xf32> to vector<16x1xf32>
    %cst_10 = arith.constant dense<0.000000e+00> : vector<16x128xf32>
    %18 = tpu.matmul %16, %15, %cst_10 {dimension_numbers = #tpu.dot_dimension_numbers<[1], [0], [0], [1], [0, 0, 1, 1], [], []>} : vector<16x32xf32>, vector<32x128xf32>, vector<16x128xf32> -> vector<16x128xf32>
    %19 = vector.broadcast %17 : vector<16x1xf32> to vector<16x128xf32>
    %20 = arith.addf %18, %19 : vector<16x128xf32>
    %cst_11 = arith.constant 0.000000e+00 : f32
    %21 = vector.broadcast %cst_11 : f32 to vector<16x128xf32>
    %22 = arith.maximumf %20, %21 : vector<16x128xf32>
    %c96 = arith.constant 96 : index
    %c0_12 = arith.constant 0 : index
    %23 = vector.load %arg2[%c96, %c0_12] : memref<128x32xf32, #tpu.memory_space<vmem>>, vector<16x1xf32>
    %24 = vector.extract_strided_slice %1 {offsets = [0, 3], sizes = [1, 1], strides = [1, 1]} : vector<32x4xf32> to vector<1x1xf32>
    %25 = vector.broadcast %23 : vector<16x1xf32> to vector<16x128xf32>
    %26 = arith.mulf %25, %22 : vector<16x128xf32>
    %cst_13 = arith.constant dense<0.000000e+00> : vector<128xf32>
    %27 = vector.multi_reduction <add>, %26, %cst_13 [0] : vector<16x128xf32> to vector<128xf32>
    %28 = vector.shape_cast %27 : vector<128xf32> to vector<1x128xf32>
    %29 = vector.broadcast %24 : vector<1x1xf32> to vector<1x128xf32>
    %30 = arith.addf %28, %29 : vector<1x128xf32>
    %c0_14 = arith.constant 0 : index
    %c0_15 = arith.constant 0 : index
    %31 = vector.load %arg4[%c0_14, %c0_15] : memref<1x128xf32, #tpu.memory_space<vmem>>, vector<1x128xf32>
    tpu.vector_store %arg4[%c0_14, %c0_15], %30 {strides = array<i32>} : memref<1x128xf32, #tpu.memory_space<vmem>>, vector<1x128xf32>,
    return
  }
  func.func @transform_0(%arg0: i32) -> (i32, i32) {
    %c0_i32 = arith.constant 0 : i32
    %c0_i32_0 = arith.constant 0 : i32
    return %c0_i32, %arg0 : i32, i32
  }
  func.func @transform_1(%arg0: i32) -> (i32, i32) {
    %c0_i32 = arith.constant 0 : i32
    %c0_i32_0 = arith.constant 0 : i32
    %c0_i32_1 = arith.constant 0 : i32
    return %c0_i32, %c0_i32_0 : i32, i32
  }
  func.func @transform_2(%arg0: i32) -> (i32, i32) {
    %c0_i32 = arith.constant 0 : i32
    %c0_i32_0 = arith.constant 0 : i32
    %c0_i32_1 = arith.constant 0 : i32
    return %c0_i32, %c0_i32_0 : i32, i32
  }
  func.func @transform_3(%arg0: i32) -> (i32, i32) {
    %c0_i32 = arith.constant 0 : i32
    %c0_i32_0 = arith.constant 0 : i32
    return %c0_i32, %arg0 : i32, i32
  }
}

</mosaic_0001>

<llo_original>
// kernel: tpu_custom_call.1
$region0: #{tpu_custom_call.1}
  #allocation0 [shape = 'u32[]', space=smem, size = 0x4, offset = 0x4, fixed_abs, tag = 'smem constant byte address 0x4 - core index']
  #allocation1 [shape = 'u32[144,128]{1,0:T(1,128)}', space=vmem, size = 0x12000, scoped, tag = 'internal scratch']
  %s0 = inlined_call_operand.vmem [shape: f32[32,128], index: 0, kind: input, shape index: {}]
  %s1 = inlined_call_operand.vmem [shape: f32[128,32], index: 1, kind: input, shape index: {}]
  %s2 = inlined_call_operand.vmem [shape: f32[32,4], index: 2, kind: input, shape index: {}]
  %s3 = inlined_call_operand.hbm [shape: f32[1,128], index: 3, kind: output, shape index: {}]
  %s4 = sld [smem:[#allocation0]]
  $region22: #{tpu_custom_call.1} parent=0
    _
  %s6 = ssub.s32 1, %s4
  %s7 = scalar_select 0, %s6, %s4
  $region1: #{tpu_custom_call.1} parent=0
    #allocation2 [shape = 'u8[512]{0}', space=vmem, size = 0x400, scoped, tag = 'output window, operand 0, single buffered']
    #allocation3 [shape = 's32[1]{0}', space=sflag, size = 0x4, scoped, tag = 'scoped memory for tpu_custom_call.1']
    %8 = vsyncpa [#allocation3], 0
    // Predicated region
    $region2: #{tpu_custom_call.1} parent=1 // pred_check
      _
    $region3: #{tpu_custom_call.1} parent=1 // pred_check_branch
      %10 = sbr.rel (0) target = $region5
    $region4: #{tpu_custom_call.1} parent=1 // pred_region
      _
    $region5: #{tpu_custom_call.1} parent=1 // pred_fallthru
      _
    // Predicated region
    $region6: #{tpu_custom_call.1} parent=1 // pred_check
      _
    $region7: #{tpu_custom_call.1} parent=1 // pred_check_branch
      %12 = sbr.rel (0) target = $region9
    $region8: #{tpu_custom_call.1} parent=1 // pred_region
      _
    $region9: #{tpu_custom_call.1} parent=1 // pred_fallthru
      _
    // Predicated region
    $region10: #{tpu_custom_call.1} parent=1 // pred_check
      _
    $region11: #{tpu_custom_call.1} parent=1 // pred_check_branch
      %14 = sbr.rel (0) target = $region13
    $region12: #{tpu_custom_call.1} parent=1 // pred_region
      _
    $region13: #{tpu_custom_call.1} parent=1 // pred_fallthru
      _
    %v15 = vld [vmem:[%s0] sm:$0xff]
    %v16 = vld [vmem:[%s0 + $0x8] sm:$0xff]
    %v17 = vld [vmem:[%s0 + $0x10] sm:$0xff]
    %v18 = vld [vmem:[%s0 + $0x18] sm:$0xff]
    %v19 = vld [vmem:[%s2] sm:$0xff]
    %v20 = vld [vmem:[%s2 + $0x8] sm:$0xff]
    %v21 = vld [vmem:[%s2 + $0x10] sm:$0xff]
    %v22 = vld [vmem:[%s2 + $0x18] sm:$0xff]
    %v23 = vld [vmem:[%s1] sm:$0xff]
    %v24 = vld [vmem:[%s1 + $0x8] sm:$0xff]
    %26 = vset.pattern.permute.xlu0 0
    %27 = vperm.xlu0 %26, %v19
    %v28 = vpop.permute.xlu0 %27
    %31 = vset.pattern.permute.xlu0 0
    %32 = vperm.xlu0 %31, %v20
    %v33 = vpop.permute.xlu0 %32
    %vm35 = vcmask 261120
    %v37 = vsel %vm35, %v23, 0
    %v40 = vsel %vm35, %v24, 0
    %42 = vmatprep.subr.mxu0 0.0
    %43 = vmatpush1.msra.mxu0 0.0
    %44 = vmatprep.subr.mxu0 0.0
    %45 = vmatpush1.msra.mxu0 0.0
    %46 = vmatprep.subr.mxu0 0.0
    %47 = vmatpush1.msra.mxu0 0.0
    %48 = vmatprep.subr.mxu0 0.0
    %49 = vmatpush1.msra.mxu0 0.0
    %50 = vmatprep.subr.mxu0 0.0
    %51 = vmatpush1.msra.mxu0 0.0
    %52 = vmatprep.subr.mxu0 0.0
    %53 = vmatpush1.msra.mxu0 0.0
    %54 = vmatprep.subr.mxu0 0.0
    %55 = vmatpush1.msra.mxu0 0.0
    %56 = vmatprep.subr.mxu0 0.0
    %57 = vmatpush1.msra.mxu0 0.0
    %58 = vmatprep.subr.mxu0 0.0
    %59 = vmatpush1.msra.mxu0 0.0
    %60 = vmatprep.subr.mxu0 0.0
    %61 = vmatpush1.msra.mxu0 0.0
    %62 = vmatprep.subr.mxu0 0.0
    %63 = vmatpush1.msra.mxu0 0.0
    %64 = vmatprep.subr.mxu0 0.0
    %65 = vmatpush1.msra.mxu0 0.0
    %66 = vmatprep.subr.mxu0 0.0
    %67 = vmatpush1.msra.mxu0 %v18
    %68 = vmatprep.subr.mxu0 0.0
    %69 = vmatpush1.msra.mxu0 %v17
    %70 = vmatprep.subr.mxu0 0.0
    %71 = vmatpush1.msra.mxu0 %v16
    %72 = vmatprep.subr.mxu0 0.0
    %73 = vmatpush1.msra.mxu0 %v15
    %74 = vmatprep.subr.mxu0 0.0
    %75 = vmatpush2.msra.mxu0 0.0
    %76 = vmatprep.subr.mxu0 0.0
    %77 = vmatpush2.msra.mxu0 0.0
    %78 = vmatprep.subr.mxu0 0.0
    %79 = vmatpush2.msra.mxu0 0.0
    %80 = vmatprep.subr.mxu0 0.0
    %81 = vmatpush2.msra.mxu0 0.0
    %82 = vmatprep.subr.mxu0 0.0
    %83 = vmatpush2.msra.mxu0 0.0
    %84 = vmatprep.subr.mxu0 0.0
    %85 = vmatpush2.msra.mxu0 0.0
    %86 = vmatprep.subr.mxu0 0.0
    %87 = vmatpush2.msra.mxu0 0.0
    %88 = vmatprep.subr.mxu0 0.0
    %89 = vmatpush2.msra.mxu0 0.0
    %90 = vmatprep.subr.mxu0 0.0
    %91 = vmatpush2.msra.mxu0 0.0
    %92 = vmatprep.subr.mxu0 0.0
    %93 = vmatpush2.msra.mxu0 0.0
    %94 = vmatprep.subr.mxu0 0.0
    %95 = vmatpush2.msra.mxu0 0.0
    %96 = vmatprep.subr.mxu0 0.0
    %97 = vmatpush2.msra.mxu0 0.0
    %98 = vmatprep.subr.mxu0 0.0
    %99 = vmatpush2.msra.mxu0 0.0
    %100 = vmatprep.subr.mxu0 0.0
    %101 = vmatpush2.msra.mxu0 0.0
    %102 = vmatprep.subr.mxu0 0.0
    %103 = vmatpush2.msra.mxu0 0.0
    %104 = vmatprep.subr.mxu0 0.0
    %105 = vmatpush2.msra.mxu0 0.0
    %106 = vmatprep.mubr.f32.mxu0 0.0
    %107 = vmatmul.mubr.f32.gmra.mxu0 %v37
    %v108 = vpop.f32.mrf.mxu0
    %v109 = vadd.f32 %v28, %v108
    %v110 = vpop.f32.mrf.mxu0
    %111 = vmatprep.mubr.f32.mxu0 0.0
    %112 = vmatmul.mubr.f32.gmra.mxu0 %v40
    %v113 = vpop.f32.mrf.mxu0
    %v114 = vadd.f32 %v33, %v113
    %v115 = vpop.f32.mrf.mxu0
    %116 = vdwg.mxu0
    %v117 = vmax.f32 %v109, 0.0
    %v118 = vmax.f32 %v114, 0.0
    %v119 = vld [vmem:[%s1 + $0x20] sm:$0xff]
    %v120 = vld [vmem:[%s1 + $0x28] sm:$0xff]
    %v121 = vld [vmem:[%s1 + $0x30] sm:$0xff]
    %v122 = vld [vmem:[%s1 + $0x38] sm:$0xff]
    %123 = vset.pattern.permute.xlu0 1
    %124 = vperm.xlu0 %123, %v19
    %v125 = vpop.permute.xlu0 %124
    %127 = vset.pattern.permute.xlu0 1
    %128 = vperm.xlu0 %127, %v20
    %v129 = vpop.permute.xlu0 %128
    %132 = vset.pattern.permute.xlu0 1
    %133 = vperm.xlu0 %132, %v21
    %v134 = vpop.permute.xlu0 %133
    %137 = vset.pattern.permute.xlu0 1
    %138 = vperm.xlu0 %137, %v22
    %v139 = vpop.permute.xlu0 %138
    %vm141 = vcmask 130048
    %v143 = vsel %vm141, %v119, 0
    %v146 = vsel %vm141, %v120, 0
    %v149 = vsel %vm141, %v121, 0
    %v152 = vsel %vm141, %v122, 0
    %154 = vmatprep.subr.mxu0 0.0
    %155 = vmatpush1.msra.mxu0 0.0
    %156 = vmatprep.subr.mxu0 0.0
    %157 = vmatpush1.msra.mxu0 0.0
    %158 = vmatprep.subr.mxu0 0.0
    %159 = vmatpush1.msra.mxu0 0.0
    %160 = vmatprep.subr.mxu0 0.0
    %161 = vmatpush1.msra.mxu0 0.0
    %162 = vmatprep.subr.mxu0 0.0
    %163 = vmatpush1.msra.mxu0 0.0
    %164 = vmatprep.subr.mxu0 0.0
    %165 = vmatpush1.msra.mxu0 0.0
    %166 = vmatprep.subr.mxu0 0.0
    %167 = vmatpush1.msra.mxu0 0.0
    %168 = vmatprep.subr.mxu0 0.0
    %169 = vmatpush1.msra.mxu0 0.0
    %170 = vmatprep.subr.mxu0 0.0
    %171 = vmatpush1.msra.mxu0 0.0
    %172 = vmatprep.subr.mxu0 0.0
    %173 = vmatpush1.msra.mxu0 0.0
    %174 = vmatprep.subr.mxu0 0.0
    %175 = vmatpush1.msra.mxu0 0.0
    %176 = vmatprep.subr.mxu0 0.0
    %177 = vmatpush1.msra.mxu0 0.0
    %178 = vmatprep.subr.mxu0 0.0
    %179 = vmatpush1.msra.mxu0 0.0
    %180 = vmatprep.subr.mxu0 0.0
    %181 = vmatpush1.msra.mxu0 0.0
    %182 = vmatprep.subr.mxu0 0.0
    %183 = vmatpush1.msra.mxu0 %v118
    %184 = vmatprep.subr.mxu0 0.0
    %185 = vmatpush1.msra.mxu0 %v117
    %186 = vmatprep.subr.mxu0 0.0
    %187 = vmatpush2.msra.mxu0 0.0
    %188 = vmatprep.subr.mxu0 0.0
    %189 = vmatpush2.msra.mxu0 0.0
    %190 = vmatprep.subr.mxu0 0.0
    %191 = vmatpush2.msra.mxu0 0.0
    %192 = vmatprep.subr.mxu0 0.0
    %193 = vmatpush2.msra.mxu0 0.0
    %194 = vmatprep.subr.mxu0 0.0
    %195 = vmatpush2.msra.mxu0 0.0
    %196 = vmatprep.subr.mxu0 0.0
    %197 = vmatpush2.msra.mxu0 0.0
    %198 = vmatprep.subr.mxu0 0.0
    %199 = vmatpush2.msra.mxu0 0.0
    %200 = vmatprep.subr.mxu0 0.0
    %201 = vmatpush2.msra.mxu0 0.0
    %202 = vmatprep.subr.mxu0 0.0
    %203 = vmatpush2.msra.mxu0 0.0
    %204 = vmatprep.subr.mxu0 0.0
    %205 = vmatpush2.msra.mxu0 0.0
    %206 = vmatprep.subr.mxu0 0.0
    %207 = vmatpush2.msra.mxu0 0.0
    %208 = vmatprep.subr.mxu0 0.0
    %209 = vmatpush2.msra.mxu0 0.0
    %210 = vmatprep.subr.mxu0 0.0
    %211 = vmatpush2.msra.mxu0 0.0
    %212 = vmatprep.subr.mxu0 0.0
    %213 = vmatpush2.msra.mxu0 0.0
    %214 = vmatprep.subr.mxu0 0.0
    %215 = vmatpush2.msra.mxu0 0.0
    %216 = vmatprep.subr.mxu0 0.0
    %217 = vmatpush2.msra.mxu0 0.0
    %218 = vmatprep.mubr.f32.mxu0 0.0
    %219 = vmatmul.mubr.f32.gmra.mxu0 %v143
    %v220 = vpop.f32.mrf.mxu0
    %v221 = vadd.f32 %v125, %v220
    %v222 = vpop.f32.mrf.mxu0
    %223 = vmatprep.mubr.f32.mxu0 0.0
    %224 = vmatmul.mubr.f32.gmra.mxu0 %v146
    %v225 = vpop.f32.mrf.mxu0
    %v226 = vadd.f32 %v129, %v225
    %v227 = vpop.f32.mrf.mxu0
    %228 = vmatprep.mubr.f32.mxu0 0.0
    %229 = vmatmul.mubr.f32.gmra.mxu0 %v149
    %v230 = vpop.f32.mrf.mxu0
    %v231 = vadd.f32 %v134, %v230
    %v232 = vpop.f32.mrf.mxu0
    %233 = vmatprep.mubr.f32.mxu0 0.0
    %234 = vmatmul.mubr.f32.gmra.mxu0 %v152
    %v235 = vpop.f32.mrf.mxu0
    %v236 = vadd.f32 %v139, %v235
    %v237 = vpop.f32.mrf.mxu0
    %238 = vdwg.mxu0
    %v239 = vmax.f32 %v221, 0.0
    %v240 = vmax.f32 %v226, 0.0
    %v241 = vmax.f32 %v231, 0.0
    %v242 = vmax.f32 %v236, 0.0
    %v243 = vld [vmem:[%s1 + $0x40] sm:$0xff]
    %v244 = vld [vmem:[%s1 + $0x48] sm:$0xff]
    %245 = vset.pattern.permute.xlu0 2
    %246 = vperm.xlu0 %245, %v19
    %v247 = vpop.permute.xlu0 %246
    %249 = vset.pattern.permute.xlu0 2
    %250 = vperm.xlu0 %249, %v20
    %v251 = vpop.permute.xlu0 %250
    %v254 = vsel %vm35, %v243, 0
    %v257 = vsel %vm35, %v244, 0
    %259 = vmatprep.subr.mxu0 0.0
    %260 = vmatpush1.msra.mxu0 0.0
    %261 = vmatprep.subr.mxu0 0.0
    %262 = vmatpush1.msra.mxu0 0.0
    %263 = vmatprep.subr.mxu0 0.0
    %264 = vmatpush1.msra.mxu0 0.0
    %265 = vmatprep.subr.mxu0 0.0
    %266 = vmatpush1.msra.mxu0 0.0
    %267 = vmatprep.subr.mxu0 0.0
    %268 = vmatpush1.msra.mxu0 0.0
    %269 = vmatprep.subr.mxu0 0.0
    %270 = vmatpush1.msra.mxu0 0.0
    %271 = vmatprep.subr.mxu0 0.0
    %272 = vmatpush1.msra.mxu0 0.0
    %273 = vmatprep.subr.mxu0 0.0
    %274 = vmatpush1.msra.mxu0 0.0
    %275 = vmatprep.subr.mxu0 0.0
    %276 = vmatpush1.msra.mxu0 0.0
    %277 = vmatprep.subr.mxu0 0.0
    %278 = vmatpush1.msra.mxu0 0.0
    %279 = vmatprep.subr.mxu0 0.0
    %280 = vmatpush1.msra.mxu0 0.0
    %281 = vmatprep.subr.mxu0 0.0
    %282 = vmatpush1.msra.mxu0 0.0
    %283 = vmatprep.subr.mxu0 0.0
    %284 = vmatpush1.msra.mxu0 %v242
    %285 = vmatprep.subr.mxu0 0.0
    %286 = vmatpush1.msra.mxu0 %v241
    %287 = vmatprep.subr.mxu0 0.0
    %288 = vmatpush1.msra.mxu0 %v240
    %289 = vmatprep.subr.mxu0 0.0
    %290 = vmatpush1.msra.mxu0 %v239
    %291 = vmatprep.subr.mxu0 0.0
    %292 = vmatpush2.msra.mxu0 0.0
    %293 = vmatprep.subr.mxu0 0.0
    %294 = vmatpush2.msra.mxu0 0.0
    %295 = vmatprep.subr.mxu0 0.0
    %296 = vmatpush2.msra.mxu0 0.0
    %297 = vmatprep.subr.mxu0 0.0
    %298 = vmatpush2.msra.mxu0 0.0
    %299 = vmatprep.subr.mxu0 0.0
    %300 = vmatpush2.msra.mxu0 0.0
    %301 = vmatprep.subr.mxu0 0.0
    %302 = vmatpush2.msra.mxu0 0.0
    %303 = vmatprep.subr.mxu0 0.0
    %304 = vmatpush2.msra.mxu0 0.0
    %305 = vmatprep.subr.mxu0 0.0
    %306 = vmatpush2.msra.mxu0 0.0
    %307 = vmatprep.subr.mxu0 0.0
    %308 = vmatpush2.msra.mxu0 0.0
    %309 = vmatprep.subr.mxu0 0.0
    %310 = vmatpush2.msra.mxu0 0.0
    %311 = vmatprep.subr.mxu0 0.0
    %312 = vmatpush2.msra.mxu0 0.0
    %313 = vmatprep.subr.mxu0 0.0
    %314 = vmatpush2.msra.mxu0 0.0
    %315 = vmatprep.subr.mxu0 0.0
    %316 = vmatpush2.msra.mxu0 0.0
    %317 = vmatprep.subr.mxu0 0.0
    %318 = vmatpush2.msra.mxu0 0.0
    %319 = vmatprep.subr.mxu0 0.0
    %320 = vmatpush2.msra.mxu0 0.0
    %321 = vmatprep.subr.mxu0 0.0
    %322 = vmatpush2.msra.mxu0 0.0
    %323 = vmatprep.mubr.f32.mxu0 0.0
    %324 = vmatmul.mubr.f32.gmra.mxu0 %v254
    %v325 = vpop.f32.mrf.mxu0
    %v326 = vadd.f32 %v247, %v325
    %v327 = vpop.f32.mrf.mxu0
    %328 = vmatprep.mubr.f32.mxu0 0.0
    %329 = vmatmul.mubr.f32.gmra.mxu0 %v257
    %v330 = vpop.f32.mrf.mxu0
    %v331 = vadd.f32 %v251, %v330
    %v332 = vpop.f32.mrf.mxu0
    %333 = vdwg.mxu0
    %v334 = vmax.f32 %v326, 0.0
    %v335 = vmax.f32 %v331, 0.0
    %v336 = vld [vmem:[%s1 + $0x60] sm:$0xff]
    %v337 = vld [vmem:[%s1 + $0x68] sm:$0xff]
    %339 = vset.pattern.permute.xlu0 0
    %340 = vperm.xlu0 %339, %v336
    %v341 = vpop.permute.xlu0 %340
    %344 = vset.pattern.permute.xlu0 0
    %345 = vperm.xlu0 %344, %v337
    %v346 = vpop.permute.xlu0 %345
    %v348 = vmul.f32 %v341, %v334
    %v349 = vmul.f32 %v346, %v335
    %v350 = vadd.f32 %v348, %v349
    %v351 = vrot.slane %v350, 4
    %v352 = vadd.f32 %v350, %v351
    %v353 = vrot.slane %v352, 2
    %v354 = vadd.f32 %v352, %v353
    %v355 = vrot.slane %v354, 1
    %v356 = vadd.f32 %v354, %v355
    %357 = vset.pattern.permute.xlu0 3
    %358 = vperm.xlu0 %357, %v19
    %v359 = vpop.permute.xlu0 %358
    %v361 = vadd.f32 %v356, %v359
    %362 = vst [vmem:[#allocation2] sm:$0x1] %v361
    // Predicated region
    $region14: #{tpu_custom_call.1} parent=1 // pred_check
      _
    $region15: #{tpu_custom_call.1} parent=1 // pred_check_branch
      %364 = sbr.rel (0) target = $region17
    $region16: #{tpu_custom_call.1} parent=1 // pred_region
      %s366 = ssub.s32 16, 16
      %367 = vsyncadd [#allocation3], %s366
      %s369 = sshll.u32 [#allocation2], 4
      %s370 = int_to_ptr.vmem [resolvable:$true] %s369
      %372 = dma.vmem_to_hbm [thread:$0]  %s370, 16, %s3, [#allocation3]
    $region17: #{tpu_custom_call.1} parent=1 // pred_fallthru
      _
    // Predicated region
    $region18: #{tpu_custom_call.1} parent=1 // pred_check
      _
    $region19: #{tpu_custom_call.1} parent=1 // pred_check_branch
      %374 = sbr.rel (0) target = $region21
    $region20: #{tpu_custom_call.1} parent=1 // pred_region
      %375 = dma.done [#allocation3], 16
    $region21: #{tpu_custom_call.1} parent=1 // pred_fallthru
      _
    %376 = vsyncpa [#allocation3], 1

</llo_original>
